<compile_context>
chip_gen: v5e
topology: v5e:2x2
jax: 0.10.0
libtpu: 0.0.40
codegen_flags: <defaults>
</compile_context>

<pallas_src>
import math

import jax
import jax.numpy as jnp
from jax.experimental import pallas as pl
from jax.experimental.pallas import tpu as pltpu


# --------------------------------------------------------------------------- #
# Kernel: out = cast(x_f32 + pe_f32), pure element-wise VPU work.
# --------------------------------------------------------------------------- #
def _add_pe_kernel(x_ref, pe_ref, o_ref):
    # x_ref / o_ref: (1, TS, D) VMEM tiles; pe_ref: (TS, D) VMEM tile (f32).
    x = x_ref[...].astype(jnp.float32)
    o_ref[...] = (x + pe_ref[...]).astype(o_ref.dtype)


# --------------------------------------------------------------------------- #
# Constant PE table (register_buffer equivalent), built once and cached.
# --------------------------------------------------------------------------- #
_PE_CACHE = {}


def _build_pe_table(seq_len, d_model):
    """Sinusoidal PE table (seq_len, d_model) in float32, same math as torch."""
    position = jnp.arange(seq_len, dtype=jnp.float32)[:, None]          # (S, 1)
    div_term = jnp.exp(
        jnp.arange(0, d_model, 2, dtype=jnp.float32)
        * (-math.log(10000.0) / d_model)
    )                                                                    # (ceil(D/2),)
    angles = position * div_term                                         # (S, ceil(D/2))
    # Interleave sin/cos along the last axis: [sin0, cos0, sin1, cos1, ...]
    # (single stack+reshape; no strided lane scatters).
    pe = jnp.stack([jnp.sin(angles), jnp.cos(angles)], axis=-1)
    pe = pe.reshape(seq_len, -1)[:, :d_model]
    return pe


def _get_pe_table(seq_len, d_model):
    key = (int(seq_len), int(d_model))
    tbl = _PE_CACHE.get(key)
    if tbl is None:
        tbl = jax.block_until_ready(_build_pe_table(seq_len, d_model))
        _PE_CACHE[key] = tbl
    return tbl


# --------------------------------------------------------------------------- #
# Tile selection: ~2 MiB blocks, shrunk so the grid has enough steps to
# pipeline and to shard across both v7x TensorCores.
# --------------------------------------------------------------------------- #
def _choose_seq_tile(seq_len, batch, d_model, itemsize,
                     target_bytes=2 << 20, min_grid_steps=8):
    rows = target_bytes // max(1, d_model * itemsize)
    rows = max(16, (rows // 16) * 16)          # sublane-friendly (f32:8, bf16:16)
    rows = min(rows, seq_len)
    # Shrink until there are enough grid steps for DMA/compute/writeback overlap.
    while rows > 16 and pl.cdiv(seq_len, rows) * batch < min_grid_steps:
        rows = max(16, ((rows // 2) // 16) * 16)
    if rows >= seq_len:
        return int(seq_len)                    # full axis: always layout-legal
    return int(rows)


# --------------------------------------------------------------------------- #
# Wrapper
# --------------------------------------------------------------------------- #
def positional_encoding(x, d_model=None, max_len=5000, donated=False):
    """x: (B, S, D) float array. Returns x + sinusoidal PE, same shape/dtype.

    Set donated=True only when the caller actually donates x (e.g. via
    jax.jit donate_argnums); otherwise XLA would insert a defensive copy.
    """
    B, S, D = x.shape
    if d_model is None:
        d_model = D
    assert d_model == D, "d_model must match the last dim of x"
    assert S <= max_len, "sequence length exceeds max_len"

    # Cached constant PE buffer, pre-sliced to the live sequence length (f32).
    pe = _get_pe_table(S, d_model)

    ts = _choose_seq_tile(S, B, D, x.dtype.itemsize)
    num_s_tiles = pl.cdiv(S, ts)

    # Double-buffered footprint: x + out tiles (x dtype) + pe tile (f32), plus
    # a little slack. Keeps us safe on v5e's 16 MiB scoped default and well
    # inside v7x's 64 MiB physical VMEM.
    tile_x_bytes = ts * D * x.dtype.itemsize
    tile_pe_bytes = ts * D * 4
    vmem_bytes = 2 * (2 * tile_x_bytes + tile_pe_bytes) + (2 << 20)

    call = pl.pallas_call(
        _add_pe_kernel,
        out_shape=jax.ShapeDtypeStruct((B, S, D), x.dtype),
        grid_spec=pltpu.PrefetchScalarGridSpec(
            num_scalar_prefetch=0,
            grid=(num_s_tiles, B),                                 # batch innermost:
            in_specs=[                                             # pe block index is
                pl.BlockSpec((1, ts, D), lambda s, b: (b, s, 0)),  # unchanged -> no
                pl.BlockSpec((ts, D), lambda s, b: (s, 0)),        # re-DMA across b.
            ],
            out_specs=pl.BlockSpec((1, ts, D), lambda s, b: (b, s, 0)),
        ),
        # Both axes are independent (pure elementwise op) -> both parallel, so
        # v7x megacore can shard batch even when the seq axis has one tile.
        compiler_params=pltpu.CompilerParams(
            dimension_semantics=("parallel", "parallel"),
            vmem_limit_bytes=int(vmem_bytes),
        ),
        # Only alias when x is genuinely donated; otherwise XLA would add a
        # defensive full copy of x (doubling HBM traffic of this bandwidth op).
        input_output_aliases=({0: 0} if donated else {}),
    )
    return call(x, pe)


# --------------------------------------------------------------------------- #
# Pure-JAX reference (replica of the PyTorch module) for verification.
# --------------------------------------------------------------------------- #
def _reference(x, d_model, max_len=5000):
    position = jnp.arange(max_len, dtype=jnp.float32)[:, None]
    div_term = jnp.exp(
        jnp.arange(0, d_model, 2, dtype=jnp.float32)
        * (-math.log(10000.0) / d_model)
    )
    pe = jnp.zeros((max_len, d_model), dtype=jnp.float32)
    pe = pe.at[:, 0::2].set(jnp.sin(position * div_term))
    pe = pe.at[:, 1::2].set(jnp.cos(position * div_term))
    return x + pe[None, : x.shape[1]]


if __name__ == "__main__":
    # Small smoke-test shapes: lane-dense D (multiple of 128) like production
    # MUSIQ d_model=384; S chosen so the tile chooser exercises multi-step grids.
    B, S, D = 2, 64, 128
    key = jax.random.PRNGKey(0)
    x = jax.random.normal(key, (B, S, D), dtype=jnp.float32)

    ref = jax.block_until_ready(_reference(x, d_model=D))

    out = positional_encoding(x, d_model=D)          # donated=False: no alias
    out = jax.block_until_ready(out)

    assert out.shape == (B, S, D) and out.dtype == jnp.float32
    assert jnp.allclose(out, ref, atol=1e-5, rtol=1e-5), "mismatch vs reference"

    # Second call reuses the cached PE table (no rebuild).
    out2 = jax.block_until_ready(positional_encoding(x, d_model=D))
    assert jnp.allclose(out2, ref, atol=1e-5, rtol=1e-5)

    print("KERNEL_OK")
</pallas_src>

<mosaic_0001>
module attributes {stable_mosaic.version = 11 : i64} {
  func.func @_add_pe_kernel(%arg0: i32, %arg1: i32, %arg2: memref<1x16x128xf32, #tpu.memory_space<vmem>>, %arg3: memref<16x128xf32, #tpu.memory_space<vmem>>, %arg4: memref<1x16x128xf32, #tpu.memory_space<vmem>>) attributes {dimension_semantics = [#tpu.dimension_semantics<parallel>, #tpu.dimension_semantics<parallel>], iteration_bounds = array<i64: 4, 2>, scalar_prefetch = 0 : i64, scratch_operands = 0 : i64, tpu.core_type = #tpu.core_type<tc>, window_params = [{transform_indices = @transform_0, window_bounds = array<i64: 1, 16, 128>}, {transform_indices = @transform_1, window_bounds = array<i64: 16, 128>}, {transform_indices = @transform_2, window_bounds = array<i64: 1, 16, 128>}]} {
    %c0 = arith.constant 0 : index
    %c0_0 = arith.constant 0 : index
    %c0_1 = arith.constant 0 : index
    %0 = vector.load %arg2[%c0, %c0_0, %c0_1] : memref<1x16x128xf32, #tpu.memory_space<vmem>>, vector<1x16x128xf32>
    %c0_2 = arith.constant 0 : index
    %c0_3 = arith.constant 0 : index
    %1 = vector.load %arg3[%c0_2, %c0_3] : memref<16x128xf32, #tpu.memory_space<vmem>>, vector<16x128xf32>
    %2 = vector.shape_cast %1 : vector<16x128xf32> to vector<1x16x128xf32>
    %3 = arith.addf %0, %2 : vector<1x16x128xf32>
    %c0_4 = arith.constant 0 : index
    %c0_5 = arith.constant 0 : index
    %c0_6 = arith.constant 0 : index
    %4 = vector.load %arg4[%c0_4, %c0_5, %c0_6] : memref<1x16x128xf32, #tpu.memory_space<vmem>>, vector<1x16x128xf32>
    tpu.vector_store %arg4[%c0_4, %c0_5, %c0_6], %3 {strides = array<i32>} : memref<1x16x128xf32, #tpu.memory_space<vmem>>, vector<1x16x128xf32>,
    return
  }
  func.func @transform_0(%arg0: i32, %arg1: i32) -> (i32, i32, i32) {
    %c0_i32 = arith.constant 0 : i32
    %c0_i32_0 = arith.constant 0 : i32
    return %arg1, %arg0, %c0_i32 : i32, i32, i32
  }
  func.func @transform_1(%arg0: i32, %arg1: i32) -> (i32, i32) {
    %c0_i32 = arith.constant 0 : i32
    %c0_i32_0 = arith.constant 0 : i32
    return %arg0, %c0_i32 : i32, i32
  }
  func.func @transform_2(%arg0: i32, %arg1: i32) -> (i32, i32, i32) {
    %c0_i32 = arith.constant 0 : i32
    %c0_i32_0 = arith.constant 0 : i32
    return %arg1, %arg0, %c0_i32 : i32, i32, i32
  }
}

</mosaic_0001>

<llo_original>
// kernel: tpu_custom_call.1
$region0: #{tpu_custom_call.1}
  #allocation0 [shape = 'u32[]', space=smem, size = 0x4, offset = 0x4, fixed_abs, tag = 'smem constant byte address 0x4 - core index']
  #allocation1 [shape = 'u32[72,128]{1,0:T(1,128)}', space=vmem, size = 0x9000, scoped, tag = 'internal scratch']
  %s0 = inlined_call_operand.hbm [shape: f32[2,64,128], index: 0, kind: input, shape index: {}]
  %s1 = inlined_call_operand.hbm [shape: f32[64,128], index: 1, kind: input, shape index: {}]
  %s2 = inlined_call_operand.hbm [shape: f32[2,64,128], index: 2, kind: output, shape index: {}]
  %s3 = sld [smem:[#allocation0]]
  $region49: #{tpu_custom_call.1} parent=0
    _
  %s5 = ssub.s32 1, %s3
  %s6 = scalar_select 0, %s5, %s3
  $region1: #{tpu_custom_call.1} parent=0
    #allocation2 [shape = 'u8[16384]{0}', space=vmem, size = 0x4000, scoped, tag = 'input window, operand 0']
    #allocation3 [shape = 's32[2]{0}', space=sflag, size = 0x8, scoped, tag = 'scoped memory for tpu_custom_call.1']
    #allocation4 [shape = 's32[2]{0}', space=sflag, size = 0x8, scoped, tag = 'scoped memory for tpu_custom_call.1']
    #allocation5 [shape = 'u8[16384]{0}', space=vmem, size = 0x4000, scoped, tag = 'input window, operand 1']
    #allocation6 [shape = 's32[2]{0}', space=sflag, size = 0x8, scoped, tag = 'scoped memory for tpu_custom_call.1']
    #allocation7 [shape = 'u8[16384]{0}', space=vmem, size = 0x4000, scoped, tag = 'output window, operand 0']
    %7 = vsyncpa [#allocation3], 0
    %s8 = scalar_lea.sflag [#allocation3], 1
    %9 = vsyncpa %s8, 0
    %10 = vsyncpa [#allocation6], 0
    %s11 = scalar_lea.sflag [#allocation6], 1
    %12 = vsyncpa %s11, 0
    %13 = vsyncpa [#allocation4], 0
    %s14 = scalar_lea.sflag [#allocation4], 1
    %15 = vsyncpa %s14, 0
    loop: start=0, step=1, limit=10
    $region2: #{tpu_custom_call.1} parent=1 // loop_pre_header
      _
    $region3: #{tpu_custom_call.1} parent=1 // loop_header
      %s17 = sphi 0, %s21
      %p18 = scmp.ge.s32.totalorder %s17, 10
      %s24 = sphi 0, %s36
      %s25 = sphi 0, %s32
      %s26 = sphi 0, %s24
      %s27 = sphi 0, %s25
      %s28 = sphi 0, %s26
      %s29 = sphi 0, %s27
      %s41 = sphi 0, %s43
      %s44 = sphi 0, %s41
      %s45 = sphi 0, %s44
      %s61 = sphi 0, %s45
      %s67 = sphi 0, %s69
      %s70 = sphi 0, %s67
      %s71 = sphi 0, %s70
      %s87 = sphi 0, %s71
      %s95 = sphi 0, %s97
      %s98 = sphi 0, %s95
      %s99 = sphi 0, %s98
      %s115 = sphi 0, %s99
    $region4: #{tpu_custom_call.1} parent=1 // loop_header_branch
      %20 = sbr.rel (%p18) target = $region8
    $region5: #{tpu_custom_call.1} parent=1 // loop_body
      %s22 = ssub.s32 %s17, 1
      %s23 = ssub.s32 %s17, 2
      %s30 = sadd.s32 1, %s25
      %p31 = scmp.ge.s32.totalorder %s30, 2
      %s32 = scalar_select %p31, 0, %s30
      %s33 = sadd.s32 1, %s24
      %s34 = scalar_select %p31, %s33, %s24
      %p35 = scmp.ge.s32.totalorder %s34, 4
      %s36 = scalar_select %p35, 0, %s34
      %s37 = ssub.s32 %s25, %s32
      %s38 = ssub.s32 %s24, %s36
      %s39 = sor.u32 %s37, %s38
      %p40 = scmp.eq.s32.totalorder %s39, 0
      %s42 = sadd.s32 %s41, 1
      %s43 = scalar_select %p40, %s41, %s42
      %p46 = pneg %p40
      %p47 = scmp.eq.s32.totalorder %s17, 7
      %p48 = por %p46, %p47
      %p49 = scmp.ne.s32.totalorder %s41, %s44
      %p50 = scmp.eq.s32.totalorder %s17, 0
      %p51 = por %p49, %p50
      %p52 = scmp.ne.s32.totalorder %s41, %s44
      %p53 = scmp.eq.s32.totalorder %s22, 7
      %p54 = por %p52, %p53
      %p55 = scmp.ne.s32.totalorder %s44, %s45
      %p56 = scmp.eq.s32.totalorder %s22, 0
      %p57 = por %p55, %p56
      %p58 = scmp.ne.s32.totalorder %s44, %s45
      %p59 = scmp.eq.s32.totalorder %s23, 7
      %p60 = por %p58, %p59
      %p62 = scmp.ne.s32.totalorder %s45, %s61
      %p63 = scmp.eq.s32.totalorder %s23, 0
      %p64 = por %p62, %p63
      %s65 = ssub.s32 %s24, %s36
      %p66 = scmp.eq.s32.totalorder %s65, 0
      %s68 = sadd.s32 %s67, 1
      %s69 = scalar_select %p66, %s67, %s68
      %p72 = pneg %p66
      %p73 = scmp.eq.s32.totalorder %s17, 7
      %p74 = por %p72, %p73
      %p75 = scmp.ne.s32.totalorder %s67, %s70
      %p76 = scmp.eq.s32.totalorder %s17, 0
      %p77 = por %p75, %p76
      %p78 = scmp.ne.s32.totalorder %s67, %s70
      %p79 = scmp.eq.s32.totalorder %s22, 7
      %p80 = por %p78, %p79
      %p81 = scmp.ne.s32.totalorder %s70, %s71
      %p82 = scmp.eq.s32.totalorder %s22, 0
      %p83 = por %p81, %p82
      %p84 = scmp.ne.s32.totalorder %s70, %s71
      %p85 = scmp.eq.s32.totalorder %s23, 7
      %p86 = por %p84, %p85
      %p88 = scmp.ne.s32.totalorder %s71, %s87
      %p89 = scmp.eq.s32.totalorder %s23, 0
      %p90 = por %p88, %p89
      %s91 = ssub.s32 %s25, %s32
      %s92 = ssub.s32 %s24, %s36
      %s93 = sor.u32 %s91, %s92
      %p94 = scmp.eq.s32.totalorder %s93, 0
      %s96 = sadd.s32 %s95, 1
      %s97 = scalar_select %p94, %s95, %s96
      %p100 = pneg %p94
      %p101 = scmp.eq.s32.totalorder %s17, 7
      %p102 = por %p100, %p101
      %p103 = scmp.ne.s32.totalorder %s95, %s98
      %p104 = scmp.eq.s32.totalorder %s17, 0
      %p105 = por %p103, %p104
      %p106 = scmp.ne.s32.totalorder %s95, %s98
      %p107 = scmp.eq.s32.totalorder %s22, 7
      %p108 = por %p106, %p107
      %p109 = scmp.ne.s32.totalorder %s98, %s99
      %p110 = scmp.eq.s32.totalorder %s22, 0
      %p111 = por %p109, %p110
      %p112 = scmp.ne.s32.totalorder %s98, %s99
      %p113 = scmp.eq.s32.totalorder %s23, 7
      %p114 = por %p112, %p113
      %p116 = scmp.ne.s32.totalorder %s99, %s115
      %p117 = scmp.eq.s32.totalorder %s23, 0
      %p118 = por %p116, %p117
      %p119 = scmp.le.s32.totalorder 1, %s17
      %p120 = scmp.lt.s32.totalorder %s17, 9
      %p121 = pnand %p119, %p120
      %p122 = pneg %p121
      // Predicated region
      $region9: #{tpu_custom_call.1} parent=5 // pred_check
        _
      $region10: #{tpu_custom_call.1} parent=5 // pred_check_branch
        %124 = sbr.rel (%p121) target = $region12
      $region11: #{tpu_custom_call.1} parent=5 // pred_region
        %s125 = ssub.s32 %s17, 1
      $region12: #{tpu_custom_call.1} parent=5 // pred_fallthru
        _
      %p126 = scmp.lt.s32.totalorder %s17, 8
      // Predicated region
      $region13: #{tpu_custom_call.1} parent=5 // pred_check
        %p127 = pneg %p126
      $region14: #{tpu_custom_call.1} parent=5 // pred_check_branch
        %129 = sbr.rel (%p127) target = $region16
      $region15: #{tpu_custom_call.1} parent=5 // pred_region
        // Predicated region
        $region17: #{tpu_custom_call.1} parent=15 // pred_check
          %p130 = pneg %p51
        $region18: #{tpu_custom_call.1} parent=15 // pred_check_branch
          %132 = sbr.rel (%p130) target = $region20
        $region19: #{tpu_custom_call.1} parent=15 // pred_region
          %s133 = sand.u32 %s41, 1
          %s134 = scalar_lea.sflag [#allocation3], %s133
          %s135 = sand.u32 %s41, 1
          %s136 = smul.addr %s135, 16
          %s137 = scalar_lea.vmem [#allocation2], %s136
          %s138 = smul.u32 2, %s24
          %140 = vsyncadd %s134, 0
          %s141 = smul.addr %s25, 8
          %s142 = sadd.s32 %s138, %s141
          %s143 = smul.addr %s142, 8
          %s144 = scalar_lea.hbm %s0, %s143
          %s145 = sshll.u32 %s144, 4
          %s146 = int_to_ptr.hbm [resolvable:$true] %s145
          %s147 = sshll.u32 %s137, 4
          %s148 = int_to_ptr.vmem [resolvable:$true] %s147
          %153 = dma.hbm_to_vmem [thread:$0]  %s146, 256, %s148, %s134, 128, 128, 8
        $region20: #{tpu_custom_call.1} parent=15 // pred_fallthru
          _
        // Predicated region
        $region21: #{tpu_custom_call.1} parent=15 // pred_check
          %p154 = pneg %p77
        $region22: #{tpu_custom_call.1} parent=15 // pred_check_branch
          %156 = sbr.rel (%p154) target = $region24
        $region23: #{tpu_custom_call.1} parent=15 // pred_region
          %s157 = sand.u32 %s67, 1
          %s158 = scalar_lea.sflag [#allocation6], %s157
          %s159 = sand.u32 %s67, 1
          %s160 = smul.addr %s159, 16
          %s161 = scalar_lea.vmem [#allocation5], %s160
          %s162 = smul.u32 2, %s24
          %164 = vsyncadd %s158, 0
          %s165 = smul.addr %s162, 8
          %s166 = scalar_lea.hbm %s1, %s165
          %s167 = sshll.u32 %s166, 4
          %s168 = int_to_ptr.hbm [resolvable:$true] %s167
          %s169 = sshll.u32 %s161, 4
          %s170 = int_to_ptr.vmem [resolvable:$true] %s169
          %175 = dma.hbm_to_vmem [thread:$0]  %s168, 256, %s170, %s158, 128, 128, 8
        $region24: #{tpu_custom_call.1} parent=15 // pred_fallthru
          _
      $region16: #{tpu_custom_call.1} parent=5 // pred_fallthru
        _
      %p176 = scmp.le.s32.totalorder 1, %s17
      %p177 = scmp.lt.s32.totalorder %s17, 9
      %p178 = pnand %p176, %p177
      %p179 = pneg %p178
      // Predicated region
      $region25: #{tpu_custom_call.1} parent=5 // pred_check
        _
      $region26: #{tpu_custom_call.1} parent=5 // pred_check_branch
        %181 = sbr.rel (%p178) target = $region28
      $region27: #{tpu_custom_call.1} parent=5 // pred_region
        %s182 = ssub.s32 %s17, 1
        %s183 = sand.u32 %s44, 1
        %s184 = scalar_lea.sflag [#allocation3], %s183
        %s185 = sand.u32 %s44, 1
        %s186 = smul.addr %s185, 16
        %s187 = scalar_lea.vmem [#allocation2], %s186
        // Predicated region
        $region29: #{tpu_custom_call.1} parent=27 // pred_check
          %p188 = pneg %p57
        $region30: #{tpu_custom_call.1} parent=27 // pred_check_branch
          %190 = sbr.rel (%p188) target = $region32
        $region31: #{tpu_custom_call.1} parent=27 // pred_region
          %192 = dma.done %s184, 256
        $region32: #{tpu_custom_call.1} parent=27 // pred_fallthru
          _
        %s193 = sand.u32 %s70, 1
        %s194 = scalar_lea.sflag [#allocation6], %s193
        %s195 = sand.u32 %s70, 1
        %s196 = smul.addr %s195, 16
        %s197 = scalar_lea.vmem [#allocation5], %s196
        // Predicated region
        $region33: #{tpu_custom_call.1} parent=27 // pred_check
          %p198 = pneg %p83
        $region34: #{tpu_custom_call.1} parent=27 // pred_check_branch
          %200 = sbr.rel (%p198) target = $region36
        $region35: #{tpu_custom_call.1} parent=27 // pred_region
          %202 = dma.done %s194, 256
        $region36: #{tpu_custom_call.1} parent=27 // pred_fallthru
          _
        %s203 = sand.u32 %s44, 1
        %s204 = scalar_lea.sflag [#allocation3], %s203
        %s205 = sand.u32 %s44, 1
        %s206 = smul.addr %s205, 16
        %s207 = scalar_lea.vmem [#allocation2], %s206
        %p208 = pneg %p57
        %p209 = pneg %p54
        %s210 = sand.u32 %s70, 1
        %s211 = scalar_lea.sflag [#allocation6], %s210
        %s212 = sand.u32 %s70, 1
        %s213 = smul.addr %s212, 16
        %s214 = scalar_lea.vmem [#allocation5], %s213
        %p215 = pneg %p83
        %p216 = pneg %p80
        %p217 = pneg %p111
        %p218 = pneg %p108
        %s219 = sand.u32 %s98, 1
        %s220 = scalar_lea.sflag [#allocation4], %s219
        %s221 = sand.u32 %s98, 1
        %s222 = smul.addr %s221, 16
        %s223 = scalar_lea.vmem [#allocation7], %s222
        %s224 = smul.u32 2, %s26
        %s225 = smul.u32 2, %s26
        %s226 = smul.u32 2, %s26
        %v227 = vld [vmem:[%s187] sm:$0xff]
        %v228 = vld [vmem:[%s187 + $0x8] sm:$0xff]
        %v229 = vld [vmem:[%s197] sm:$0xff]
        %v230 = vld [vmem:[%s197 + $0x8] sm:$0xff]
        %v231 = vadd.f32 %v227, %v229
        %v232 = vadd.f32 %v228, %v230
        %233 = vst [vmem:[%s223] sm:$0xff] %v231
        %234 = vst [vmem:[%s223 + $0x8] sm:$0xff] %v232
        %s235 = sand.u32 %s98, 1
        %s236 = scalar_lea.sflag [#allocation4], %s235
        %s237 = sand.u32 %s98, 1
        %s238 = smul.addr %s237, 16
        %s239 = scalar_lea.vmem [#allocation7], %s238
        // Predicated region
        $region37: #{tpu_custom_call.1} parent=27 // pred_check
          %p240 = pneg %p108
        $region38: #{tpu_custom_call.1} parent=27 // pred_check_branch
          %242 = sbr.rel (%p240) target = $region40
        $region39: #{tpu_custom_call.1} parent=27 // pred_region
          %s243 = smul.u32 2, %s26
          %245 = vsyncadd %s236, 0
          %s246 = smul.addr %s27, 8
          %s247 = sadd.s32 %s243, %s246
          %s248 = smul.addr %s247, 8
          %s249 = scalar_lea.hbm %s2, %s248
          %s250 = sshll.u32 %s239, 4
          %s251 = int_to_ptr.vmem [resolvable:$true] %s250
          %s252 = sshll.u32 %s249, 4
          %s253 = int_to_ptr.hbm [resolvable:$true] %s252
          %258 = dma.vmem_to_hbm [thread:$0]  %s251, 256, %s253, %s236, 128, 128, 8
        $region40: #{tpu_custom_call.1} parent=27 // pred_fallthru
          _
      $region28: #{tpu_custom_call.1} parent=5 // pred_fallthru
        _
      %p259 = scmp.le.s32.totalorder 2, %s17
      // Predicated region
      $region41: #{tpu_custom_call.1} parent=5 // pred_check
        %p260 = pneg %p259
      $region42: #{tpu_custom_call.1} parent=5 // pred_check_branch
        %262 = sbr.rel (%p260) target = $region44
      $region43: #{tpu_custom_call.1} parent=5 // pred_region
        %s263 = ssub.s32 %s17, 2
        // Predicated region
        $region45: #{tpu_custom_call.1} parent=43 // pred_check
          %p264 = pneg %p114
        $region46: #{tpu_custom_call.1} parent=43 // pred_check_branch
          %266 = sbr.rel (%p264) target = $region48
        $region47: #{tpu_custom_call.1} parent=43 // pred_region
          %s267 = sand.u32 %s99, 1
          %s268 = scalar_lea.sflag [#allocation4], %s267
          %s269 = sand.u32 %s99, 1
          %s270 = smul.addr %s269, 16
          %s271 = scalar_lea.vmem [#allocation7], %s270
          %273 = dma.done %s268, 256
        $region48: #{tpu_custom_call.1} parent=43 // pred_fallthru
          _
      $region44: #{tpu_custom_call.1} parent=5 // pred_fallthru
        _
    $region6: #{tpu_custom_call.1} parent=1 // loop_footer
      %s21 = sadd.s32 1, %s17
    $region7: #{tpu_custom_call.1} parent=1 // loop_footer_branch
      %16 = sbr.rel target = $region3
    $region8: #{tpu_custom_call.1} parent=1 // loop_exit
      _
    %274 = vsyncpa [#allocation3], 1
    %s275 = scalar_lea.sflag [#allocation3], 1
    %276 = vsyncpa %s275, 1
    %277 = vsyncpa [#allocation6], 1
    %s278 = scalar_lea.sflag [#allocation6], 1
    %279 = vsyncpa %s278, 1
    %280 = vsyncpa [#allocation4], 1
    %s281 = scalar_lea.sflag [#allocation4], 1
    %282 = vsyncpa %s281, 1

</llo_original>
